<compile_context>
chip_gen: v7x
topology: tpu7x:2x2x1
jax: 0.10.0
libtpu: 0.0.40
codegen_flags: <defaults>
</compile_context>

<pallas_src>
import jax
import jax.numpy as jnp
from jax.experimental import pallas as pl
from jax.experimental.pallas import tpu as pltpu

# ----------------------------- config (small, consistent with the module) ----
HIDDEN_LAYERS = 2       # hidden_layers
WIDTH = 32              # hidden_layer_width
N_STATE = 4             # n_state_dims  (unicycle-like dynamics in _f/_g)
N_CONTROL = 2           # n_control_dims (matches _g(): 4x2 control matrix)
N_INPUT = 4             # n_input_dims
N_CBF = 2               # len(cbf)
BATCH = 8

LANES = 128
# parameter-slab row layout (all blocks lane-padded to 128 columns, zero fill):
#   rows   0..3   : W0 rows (4 x 128), real data in lanes 0..31
#   rows   8..135 : W1 block (128 x 128), real data in [0:32, 0:32]
#   rows 136..263 : W2 block (128 x 128), real data in [0:32, 0:32]
#   rows 264..391 : W3 block (128 x 128), real data in [0:32, 0:2]
#   rows 392..395 : biases b0..b3 (1 x 128 each)
#   row  396      : obstacle scalars [x_obst_x, x_obst_y, r_obst, v_lim]
W_ROW_START = (0, 8, 136, 264)
BIAS_ROW = 392
OBST_ROW = 396
PARAM_ROWS = 400                  # 50 * 8 rows, 128 lanes -> 200 KiB, one DMA

# packed-output lane layout: [u_hat(2) | A_flat(cbf*ctrl = 4) | b(2) | zeros(120)]
U_OFF = 0
A_OFF = N_CONTROL
B_OFF = N_CONTROL + N_CBF * N_CONTROL
PACKED = N_CONTROL + N_CBF * N_CONTROL + N_CBF   # 8 meaningful lanes


# ----------------------------- fused Pallas kernel ---------------------------
def class_knn_kernel(x_ref, p_ref, out_ref):
    """Fused policy MLP + batched HOCBF parameter computation.

    x_ref   : (B, N_STATE)      VMEM, native batch-major layout
    p_ref   : (400, 128)        VMEM, packed MLP weights/biases + obstacle row
    out_ref : (B, 128)          VMEM, lane-dense packed output slab

    Dynamics (ClassKNN._f/_g):
      f(x) = [v*cos(th), v*sin(th), 0, 0]^T,   g = [[0,0],[0,0],[1,0],[0,1]]
    """
    x = x_ref[...]                                   # (B, 4) f32
    nb = x.shape[0]

    # ---------------- policy MLP: Linear -> Tanh -> ... -> Linear -------------
    # layer 0: K = 4 contraction -> VPU broadcast-FMA, 2-way tree of partials
    # (MXU round-trip not worth it for a K=4 contraction).
    w00 = p_ref[0:1, :]
    w01 = p_ref[1:2, :]
    w02 = p_ref[2:3, :]
    w03 = p_ref[3:4, :]
    b0 = p_ref[BIAS_ROW:BIAS_ROW + 1, :]                           # (1, 128)
    t0 = x[:, 0:1] * w00 + x[:, 1:2] * w01
    t1 = x[:, 2:3] * w02 + x[:, 3:4] * w03
    h = jnp.tanh(b0 + t0 + t1)                                      # (B, 128)
    # lanes 32..127 are exact zeros (zero weights + zero bias, tanh(0)=0).

    # hidden layers: full-lane (B,128)@(128,128) MXU dots; zero-padded rows of
    # the weight blocks make the padded lanes of h contribute nothing.
    for li in (1, 2):
        w = p_ref[W_ROW_START[li]:W_ROW_START[li] + LANES, :]
        b = p_ref[BIAS_ROW + li:BIAS_ROW + li + 1, :]
        h = jnp.tanh(jnp.dot(h, w, preferred_element_type=jnp.float32) + b)

    # output layer: (B,128)@(128,128), real data only in output lanes 0..1
    w_out = p_ref[W_ROW_START[3]:W_ROW_START[3] + LANES, :]
    b_out = p_ref[BIAS_ROW + 3:BIAS_ROW + 4, :]
    u_full = jnp.dot(h, w_out, preferred_element_type=jnp.float32) + b_out
    u_hat = u_full[:, 0:N_CONTROL]                                  # (B, 2)

    # ---------------- batched HOCBF params: A = -Lgb, b = Lfb + alpha(psi0) ---
    px = x[:, 0:1]
    py = x[:, 1:2]
    v = x[:, 2:3]
    th = x[:, 3:4]

    obst = p_ref[OBST_ROW:OBST_ROW + 1, :]           # (1, 128)
    xo = obst[:, 0:1]
    yo = obst[:, 1:2]
    r = obst[:, 2:3]
    vlim = obst[:, 3:4]

    # CBF 0 (circular obstacle): h0 = (px-xo)^2 + (py-yo)^2 - r^2
    #   db0/dx = [2dx, 2dy, 0, 0]  ->  Lgb0 = [0, 0] (A row stays zero)
    dx = px - xo
    dy = py - yo
    psi0_0 = dx * dx + dy * dy - r * r
    lfb_0 = 2.0 * dx * v * jnp.cos(th) + 2.0 * dy * v * jnp.sin(th)
    # TODO(synk): the module uses MonotonicNN (learned class-K alpha) here; no
    # definition is available, so alpha(psi) = psi (identity) is used instead.
    b0c = lfb_0 + psi0_0                                            # (B, 1)

    # CBF 1 (rel. degree 1, alpha = identity): h1 = vlim^2 - v^2 - th^2
    #   db1/dx = [0, 0, -2v, -2th]  ->  Lfb1 = 0,  Lgb1 = [-2v, -2th]
    b1c = vlim * vlim - v * v - th * th                             # (B, 1)

    # ---------------- single full-width lane-dense store -----------------------
    # lanes: [u_hat(2) | A row0 = -Lgb0 = 0,0 | A row1 = -Lgb1 = 2v,2th | b0 | b1 | 0...]
    a_row0 = jnp.zeros((nb, N_CONTROL), jnp.float32)
    pad = jnp.zeros((nb, LANES - PACKED), jnp.float32)
    out_ref[...] = jnp.concatenate(
        [u_hat, a_row0, 2.0 * v, 2.0 * th, b0c, b1c, pad], axis=-1)


# ----------------------------- forward wrapper --------------------------------
def class_knn_forward(x, u, param_slab):
    """Mirrors ClassKNN.forward -> (u_hat, (u_ref, A_cbf, b_cbf))."""
    x = jnp.atleast_2d(x)
    u = jnp.atleast_2d(u)
    nb = x.shape[0]

    cost = pl.CostEstimate(
        flops=2 * nb * LANES * LANES * 3 + 2 * nb * N_INPUT * LANES,
        transcendentals=3 * nb * LANES + 2 * nb,
        bytes_accessed=(nb * N_STATE + PARAM_ROWS * LANES + nb * LANES) * 4,
    )

    slab = pl.pallas_call(
        class_knn_kernel,
        in_specs=[
            pl.BlockSpec(memory_space=pltpu.MemorySpace.VMEM),   # x
            pl.BlockSpec(memory_space=pltpu.MemorySpace.VMEM),   # packed params
        ],
        out_specs=pl.BlockSpec(memory_space=pltpu.MemorySpace.VMEM),
        out_shape=jax.ShapeDtypeStruct((nb, LANES), jnp.float32),
        cost_estimate=cost,
    )(x, param_slab)

    u_hat = slab[:, U_OFF:U_OFF + N_CONTROL]
    A_cbf = slab[:, A_OFF:A_OFF + N_CBF * N_CONTROL].reshape(nb, N_CBF, N_CONTROL)
    b_cbf = slab[:, B_OFF:B_OFF + N_CBF].reshape(nb, N_CBF, 1)

    # TODO(synk): BarrierNetLayer is a differentiable per-sample QP layer; no clean
    # Pallas equivalent, so u_hat is returned unfiltered (QP projection skipped).
    return u_hat, (u.reshape(nb, N_CONTROL, 1), A_cbf, b_cbf)


# ----------------------------- parameter packing / init ------------------------
def init_linear(key, fan_in, fan_out):
    kw, kb = jax.random.split(key)
    bound = 1.0 / (fan_in ** 0.5)
    W = jax.random.uniform(kw, (fan_in, fan_out), jnp.float32, -bound, bound)
    b = jax.random.uniform(kb, (fan_out,), jnp.float32, -bound, bound)
    return W, b


def pack_params(params, obst):
    """Pack [(W:(in,out), b:(out,)) ...] + obstacle scalars into one (400,128) slab."""
    slab = jnp.zeros((PARAM_ROWS, LANES), jnp.float32)
    for i, (W, b) in enumerate(params):
        fi, fo = W.shape
        r = W_ROW_START[i]
        slab = slab.at[r:r + fi, 0:fo].set(W)
        slab = slab.at[BIAS_ROW + i, 0:fo].set(b)
    slab = slab.at[OBST_ROW, 0:obst.shape[0]].set(obst)
    return slab


# ----------------------------- pure-JAX reference (for sanity check) -----------
def reference_forward(x, u, params, obst):
    h = x
    for i, (W, b) in enumerate(params):
        h = jnp.dot(h, W, precision=jax.lax.Precision.HIGHEST) + b
        if i < len(params) - 1:
            h = jnp.tanh(h)
    u_hat = h
    px, py, v, th = x[:, 0:1], x[:, 1:2], x[:, 2:3], x[:, 3:4]
    xo, yo, r, vlim = obst[0], obst[1], obst[2], obst[3]
    dx, dy = px - xo, py - yo
    b0 = 2.0 * dx * v * jnp.cos(th) + 2.0 * dy * v * jnp.sin(th) + dx * dx + dy * dy - r * r
    b1 = vlim * vlim - v * v - th * th
    zeros = jnp.zeros_like(v)
    A = jnp.concatenate([zeros, zeros, 2.0 * v, 2.0 * th], axis=-1).reshape(-1, N_CBF, N_CONTROL)
    bb = jnp.concatenate([b0, b1], axis=-1).reshape(-1, N_CBF, 1)
    return u_hat, (u.reshape(-1, N_CONTROL, 1), A, bb)


# ----------------------------- main --------------------------------------------
if __name__ == "__main__":
    key = jax.random.PRNGKey(0)

    layer_dims = ([(N_INPUT, WIDTH)]
                  + [(WIDTH, WIDTH)] * HIDDEN_LAYERS
                  + [(WIDTH, N_CONTROL)])
    keys = jax.random.split(key, len(layer_dims) + 1)
    params = [init_linear(keys[i], fi, fo) for i, (fi, fo) in enumerate(layer_dims)]

    # obstacle buffers (x_obst, r_obst) plus a velocity-limit constant for CBF 1
    obst = jnp.array([0.5, -0.5, 0.3, 2.0], dtype=jnp.float32)
    param_slab = pack_params(params, obst)

    kx, ku = jax.random.split(keys[-1])
    x = jax.random.uniform(kx, (BATCH, N_STATE), jnp.float32, -1.0, 1.0)
    u = jax.random.uniform(ku, (BATCH, N_CONTROL), jnp.float32, -1.0, 1.0)

    fwd = jax.jit(class_knn_forward)
    u_hat, (u_ref_out, A_cbf, b_cbf) = fwd(x, u, param_slab)
    jax.block_until_ready((u_hat, u_ref_out, A_cbf, b_cbf))

    assert u_hat.shape == (BATCH, N_CONTROL)
    assert u_ref_out.shape == (BATCH, N_CONTROL, 1)
    assert A_cbf.shape == (BATCH, N_CBF, N_CONTROL)
    assert b_cbf.shape == (BATCH, N_CBF, 1)

    ref_u_hat, (ref_u, ref_A, ref_b) = reference_forward(x, u, params, obst)
    assert jnp.allclose(u_hat, ref_u_hat, atol=5e-3, rtol=5e-3)
    assert jnp.allclose(u_ref_out, ref_u, atol=1e-6)
    assert jnp.allclose(A_cbf, ref_A, atol=5e-3, rtol=5e-3)
    assert jnp.allclose(b_cbf, ref_b, atol=5e-3, rtol=5e-3)

    print("KERNEL_OK")
</pallas_src>

<mosaic_0001>
module attributes {stable_mosaic.version = 11 : i64} {
  func.func @class_knn_kernel(%arg0: memref<8x4xf32, #tpu.memory_space<vmem>>, %arg1: memref<400x128xf32, #tpu.memory_space<vmem>>, %arg2: memref<8x128xf32, #tpu.memory_space<vmem>>) attributes {dimension_semantics = [], scalar_prefetch = 0 : i64, scratch_operands = 0 : i64, tpu.core_type = #tpu.core_type<tc>} {
    %c0 = arith.constant 0 : index
    %c0_0 = arith.constant 0 : index
    %0 = vector.load %arg0[%c0, %c0_0] : memref<8x4xf32, #tpu.memory_space<vmem>>, vector<8x4xf32>
    %c0_1 = arith.constant 0 : index
    %c0_2 = arith.constant 0 : index
    %1 = vector.load %arg1[%c0_1, %c0_2] : memref<400x128xf32, #tpu.memory_space<vmem>>, vector<1x128xf32>
    %c1 = arith.constant 1 : index
    %c0_3 = arith.constant 0 : index
    %2 = vector.load %arg1[%c1, %c0_3] : memref<400x128xf32, #tpu.memory_space<vmem>>, vector<1x128xf32>
    %c2 = arith.constant 2 : index
    %c0_4 = arith.constant 0 : index
    %3 = vector.load %arg1[%c2, %c0_4] : memref<400x128xf32, #tpu.memory_space<vmem>>, vector<1x128xf32>
    %c3 = arith.constant 3 : index
    %c0_5 = arith.constant 0 : index
    %4 = vector.load %arg1[%c3, %c0_5] : memref<400x128xf32, #tpu.memory_space<vmem>>, vector<1x128xf32>
    %c392 = arith.constant 392 : index
    %c0_6 = arith.constant 0 : index
    %5 = vector.load %arg1[%c392, %c0_6] : memref<400x128xf32, #tpu.memory_space<vmem>>, vector<1x128xf32>
    %6 = vector.extract_strided_slice %0 {offsets = [0, 0], sizes = [8, 1], strides = [1, 1]} : vector<8x4xf32> to vector<8x1xf32>
    %7 = vector.broadcast %6 : vector<8x1xf32> to vector<8x128xf32>
    %8 = vector.broadcast %1 : vector<1x128xf32> to vector<8x128xf32>
    %9 = arith.mulf %7, %8 : vector<8x128xf32>
    %10 = vector.extract_strided_slice %0 {offsets = [0, 1], sizes = [8, 1], strides = [1, 1]} : vector<8x4xf32> to vector<8x1xf32>
    %11 = vector.broadcast %10 : vector<8x1xf32> to vector<8x128xf32>
    %12 = vector.broadcast %2 : vector<1x128xf32> to vector<8x128xf32>
    %13 = arith.mulf %11, %12 : vector<8x128xf32>
    %14 = arith.addf %9, %13 : vector<8x128xf32>
    %15 = vector.extract_strided_slice %0 {offsets = [0, 2], sizes = [8, 1], strides = [1, 1]} : vector<8x4xf32> to vector<8x1xf32>
    %16 = vector.broadcast %15 : vector<8x1xf32> to vector<8x128xf32>
    %17 = vector.broadcast %3 : vector<1x128xf32> to vector<8x128xf32>
    %18 = arith.mulf %16, %17 : vector<8x128xf32>
    %19 = vector.extract_strided_slice %0 {offsets = [0, 3], sizes = [8, 1], strides = [1, 1]} : vector<8x4xf32> to vector<8x1xf32>
    %20 = vector.broadcast %19 : vector<8x1xf32> to vector<8x128xf32>
    %21 = vector.broadcast %4 : vector<1x128xf32> to vector<8x128xf32>
    %22 = arith.mulf %20, %21 : vector<8x128xf32>
    %23 = arith.addf %18, %22 : vector<8x128xf32>
    %24 = vector.broadcast %5 : vector<1x128xf32> to vector<8x128xf32>
    %25 = arith.addf %24, %14 : vector<8x128xf32>
    %26 = arith.addf %25, %23 : vector<8x128xf32>
    %27 = math.tanh %26 : vector<8x128xf32>
    %c8 = arith.constant 8 : index
    %c0_7 = arith.constant 0 : index
    %28 = vector.load %arg1[%c8, %c0_7] : memref<400x128xf32, #tpu.memory_space<vmem>>, vector<128x128xf32>
    %c393 = arith.constant 393 : index
    %c0_8 = arith.constant 0 : index
    %29 = vector.load %arg1[%c393, %c0_8] : memref<400x128xf32, #tpu.memory_space<vmem>>, vector<1x128xf32>
    %cst = arith.constant dense<0.000000e+00> : vector<8x128xf32>
    %30 = tpu.matmul %27, %28, %cst {dimension_numbers = #tpu.dot_dimension_numbers<[1], [0], [0], [1], [0, 0, 1, 1], [], []>} : vector<8x128xf32>, vector<128x128xf32>, vector<8x128xf32> -> vector<8x128xf32>
    %31 = vector.broadcast %29 : vector<1x128xf32> to vector<8x128xf32>
    %32 = arith.addf %30, %31 : vector<8x128xf32>
    %33 = math.tanh %32 : vector<8x128xf32>
    %c136 = arith.constant 136 : index
    %c0_9 = arith.constant 0 : index
    %34 = vector.load %arg1[%c136, %c0_9] : memref<400x128xf32, #tpu.memory_space<vmem>>, vector<128x128xf32>
    %c394 = arith.constant 394 : index
    %c0_10 = arith.constant 0 : index
    %35 = vector.load %arg1[%c394, %c0_10] : memref<400x128xf32, #tpu.memory_space<vmem>>, vector<1x128xf32>
    %cst_11 = arith.constant dense<0.000000e+00> : vector<8x128xf32>
    %36 = tpu.matmul %33, %34, %cst_11 {dimension_numbers = #tpu.dot_dimension_numbers<[1], [0], [0], [1], [0, 0, 1, 1], [], []>} : vector<8x128xf32>, vector<128x128xf32>, vector<8x128xf32> -> vector<8x128xf32>
    %37 = vector.broadcast %35 : vector<1x128xf32> to vector<8x128xf32>
    %38 = arith.addf %36, %37 : vector<8x128xf32>
    %39 = math.tanh %38 : vector<8x128xf32>
    %c264 = arith.constant 264 : index
    %c0_12 = arith.constant 0 : index
    %40 = vector.load %arg1[%c264, %c0_12] : memref<400x128xf32, #tpu.memory_space<vmem>>, vector<128x128xf32>
    %c395 = arith.constant 395 : index
    %c0_13 = arith.constant 0 : index
    %41 = vector.load %arg1[%c395, %c0_13] : memref<400x128xf32, #tpu.memory_space<vmem>>, vector<1x128xf32>
    %cst_14 = arith.constant dense<0.000000e+00> : vector<8x128xf32>
    %42 = tpu.matmul %39, %40, %cst_14 {dimension_numbers = #tpu.dot_dimension_numbers<[1], [0], [0], [1], [0, 0, 1, 1], [], []>} : vector<8x128xf32>, vector<128x128xf32>, vector<8x128xf32> -> vector<8x128xf32>
    %43 = vector.broadcast %41 : vector<1x128xf32> to vector<8x128xf32>
    %44 = arith.addf %42, %43 : vector<8x128xf32>
    %45 = vector.extract_strided_slice %44 {offsets = [0, 0], sizes = [8, 2], strides = [1, 1]} : vector<8x128xf32> to vector<8x2xf32>
    %46 = vector.extract_strided_slice %0 {offsets = [0, 0], sizes = [8, 1], strides = [1, 1]} : vector<8x4xf32> to vector<8x1xf32>
    %47 = vector.extract_strided_slice %0 {offsets = [0, 1], sizes = [8, 1], strides = [1, 1]} : vector<8x4xf32> to vector<8x1xf32>
    %48 = vector.extract_strided_slice %0 {offsets = [0, 2], sizes = [8, 1], strides = [1, 1]} : vector<8x4xf32> to vector<8x1xf32>
    %49 = vector.extract_strided_slice %0 {offsets = [0, 3], sizes = [8, 1], strides = [1, 1]} : vector<8x4xf32> to vector<8x1xf32>
    %c396 = arith.constant 396 : index
    %c0_15 = arith.constant 0 : index
    %50 = vector.load %arg1[%c396, %c0_15] : memref<400x128xf32, #tpu.memory_space<vmem>>, vector<1x128xf32>
    %51 = vector.extract_strided_slice %50 {offsets = [0, 0], sizes = [1, 1], strides = [1, 1]} : vector<1x128xf32> to vector<1x1xf32>
    %52 = vector.extract_strided_slice %50 {offsets = [0, 1], sizes = [1, 1], strides = [1, 1]} : vector<1x128xf32> to vector<1x1xf32>
    %53 = vector.extract_strided_slice %50 {offsets = [0, 2], sizes = [1, 1], strides = [1, 1]} : vector<1x128xf32> to vector<1x1xf32>
    %54 = vector.extract_strided_slice %50 {offsets = [0, 3], sizes = [1, 1], strides = [1, 1]} : vector<1x128xf32> to vector<1x1xf32>
    %55 = vector.broadcast %51 : vector<1x1xf32> to vector<8x1xf32>
    %56 = arith.subf %46, %55 : vector<8x1xf32>
    %57 = vector.broadcast %52 : vector<1x1xf32> to vector<8x1xf32>
    %58 = arith.subf %47, %57 : vector<8x1xf32>
    %59 = arith.mulf %56, %56 : vector<8x1xf32>
    %60 = arith.mulf %58, %58 : vector<8x1xf32>
    %61 = arith.addf %59, %60 : vector<8x1xf32>
    %62 = arith.mulf %53, %53 : vector<1x1xf32>
    %63 = vector.broadcast %62 : vector<1x1xf32> to vector<8x1xf32>
    %64 = arith.subf %61, %63 : vector<8x1xf32>
    %cst_16 = arith.constant 2.000000e+00 : f32
    %65 = vector.broadcast %cst_16 : f32 to vector<8x1xf32>
    %66 = arith.mulf %65, %56 : vector<8x1xf32>
    %67 = arith.mulf %66, %48 : vector<8x1xf32>
    %68 = math.cos %49 : vector<8x1xf32>
    %69 = arith.mulf %67, %68 : vector<8x1xf32>
    %cst_17 = arith.constant 2.000000e+00 : f32
    %70 = vector.broadcast %cst_17 : f32 to vector<8x1xf32>
    %71 = arith.mulf %70, %58 : vector<8x1xf32>
    %72 = arith.mulf %71, %48 : vector<8x1xf32>
    %73 = math.sin %49 : vector<8x1xf32>
    %74 = arith.mulf %72, %73 : vector<8x1xf32>
    %75 = arith.addf %69, %74 : vector<8x1xf32>
    %76 = arith.addf %75, %64 : vector<8x1xf32>
    %77 = arith.mulf %54, %54 : vector<1x1xf32>
    %78 = arith.mulf %48, %48 : vector<8x1xf32>
    %79 = vector.broadcast %77 : vector<1x1xf32> to vector<8x1xf32>
    %80 = arith.subf %79, %78 : vector<8x1xf32>
    %81 = arith.mulf %49, %49 : vector<8x1xf32>
    %82 = arith.subf %80, %81 : vector<8x1xf32>
    %cst_18 = arith.constant 0.000000e+00 : f32
    %83 = vector.broadcast %cst_18 : f32 to vector<8x2xf32>
    %cst_19 = arith.constant 0.000000e+00 : f32
    %84 = vector.broadcast %cst_19 : f32 to vector<8x120xf32>
    %cst_20 = arith.constant 2.000000e+00 : f32
    %85 = vector.broadcast %cst_20 : f32 to vector<8x1xf32>
    %86 = arith.mulf %85, %48 : vector<8x1xf32>
    %cst_21 = arith.constant 2.000000e+00 : f32
    %87 = vector.broadcast %cst_21 : f32 to vector<8x1xf32>
    %88 = arith.mulf %87, %49 : vector<8x1xf32>
    %89 = tpu.concatenate %45, %83, %86, %88, %76, %82, %84 in 1 : vector<8x2xf32>, vector<8x2xf32>, vector<8x1xf32>, vector<8x1xf32>, vector<8x1xf32>, vector<8x1xf32>, vector<8x120xf32> -> vector<8x128xf32>
    %c0_22 = arith.constant 0 : index
    %c0_23 = arith.constant 0 : index
    %90 = vector.load %arg2[%c0_22, %c0_23] : memref<8x128xf32, #tpu.memory_space<vmem>>, vector<8x128xf32>
    tpu.vector_store %arg2[%c0_22, %c0_23], %89 {strides = array<i32>} : memref<8x128xf32, #tpu.memory_space<vmem>>, vector<8x128xf32>,
    return
  }
}

</mosaic_0001>

<llo_original>
// kernel: class_knn_forward.1
$region0: #{class_knn_forward.1}
  #allocation0 [shape = 'u32[]', space=smem, size = 0x4, offset = 0x4, fixed_abs, tag = 'smem constant byte address 0x4 - core index']
  #allocation1 [shape = 'u32[144,128]{1,0:T(1,128)}', space=vmem, size = 0x12000, scoped, tag = 'internal scratch']
  %s0 = inlined_call_operand.vmem [shape: f32[8,4], index: 0, kind: input, shape index: {}]
  %s1 = inlined_call_operand.hbm [shape: f32[400,128], index: 1, kind: input, shape index: {}]
  %s2 = inlined_call_operand.vmem [shape: f32[8,128], index: 2, kind: output, shape index: {}]
  %s3 = sld [smem:[#allocation0]]
  $region22: #{class_knn_forward.1} parent=0
    _
  %s5 = ssub.s32 1, %s3
  %s6 = scalar_select 0, %s5, %s3
  $region1: #{class_knn_forward.1} parent=0
    #allocation2 [shape = 'u8[204800]{0}', space=vmem, size = 0x32000, scoped, tag = 'input window, operand 1, single buffered']
    #allocation3 [shape = 's32[1]{0}', space=sflag, size = 0x4, scoped, tag = 'scoped memory for class_knn_forward.1']
    %7 = vsyncpa [#allocation3], 0
    // Predicated region
    $region2: #{class_knn_forward.1} parent=1 // pred_check
      _
    $region3: #{class_knn_forward.1} parent=1 // pred_check_branch
      %9 = sbr.rel (0) target = $region5
    $region4: #{class_knn_forward.1} parent=1 // pred_region
      _
    $region5: #{class_knn_forward.1} parent=1 // pred_fallthru
      _
    // Predicated region
    $region6: #{class_knn_forward.1} parent=1 // pred_check
      _
    $region7: #{class_knn_forward.1} parent=1 // pred_check_branch
      %11 = sbr.rel (0) target = $region9
    $region8: #{class_knn_forward.1} parent=1 // pred_region
      %s13 = ssub.s32 6400, 6400
      %14 = vsyncadd [#allocation3], %s13
      %s15 = sshll.u32 [#allocation2], 4
      %s16 = int_to_ptr.vmem [resolvable:$true] %s15
      %21 = dma.hbm_to_vmem [thread:$0]  %s1, 6400, %s16, [#allocation3], 128, 128, 8
    $region9: #{class_knn_forward.1} parent=1 // pred_fallthru
      _
    // Predicated region
    $region10: #{class_knn_forward.1} parent=1 // pred_check
      _
    $region11: #{class_knn_forward.1} parent=1 // pred_check_branch
      %23 = sbr.rel (0) target = $region13
    $region12: #{class_knn_forward.1} parent=1 // pred_region
      %24 = dma.done [#allocation3], 6400
    $region13: #{class_knn_forward.1} parent=1 // pred_fallthru
      _
    %v25 = vld [vmem:[%s0] sm:$0xff]
    %v26 = vld [vmem:[#allocation2] sm:$0x1]
    %v27 = vld [vmem:[#allocation2 + $0x1] sm:$0x1]
    %v28 = vld [vmem:[#allocation2 + $0x2] sm:$0x1]
    %v29 = vld [vmem:[#allocation2 + $0x3] sm:$0x1]
    %v30 = vld [vmem:[#allocation2 + $0x188] sm:$0x1]
    %32 = vset.pattern.permute.xlu0 0
    %33 = vperm.xlu0 %32, %v25
    %v34 = vpop.permute.xlu0 %33
    %v36 = vlaneseq
    %v37 = vshrl.u32 %v36, 7
    %v38 = vsub.s32 0, %v37
    %v39 = vrot.slane %v26, %v38
    %v40 = vmul.f32 %v34, %v39
    %41 = vset.pattern.permute.xlu0 1
    %42 = vperm.xlu0 %41, %v25
    %v43 = vpop.permute.xlu0 %42
    %v45 = vlaneseq
    %v46 = vshrl.u32 %v45, 7
    %v47 = vsub.s32 0, %v46
    %v48 = vrot.slane %v27, %v47
    %v49 = vmul.f32 %v43, %v48
    %v50 = vadd.f32 %v40, %v49
    %51 = vset.pattern.permute.xlu0 2
    %52 = vperm.xlu0 %51, %v25
    %v53 = vpop.permute.xlu0 %52
    %v55 = vlaneseq
    %v56 = vshrl.u32 %v55, 7
    %v57 = vsub.s32 0, %v56
    %v58 = vrot.slane %v28, %v57
    %v59 = vmul.f32 %v53, %v58
    %60 = vset.pattern.permute.xlu0 3
    %61 = vperm.xlu0 %60, %v25
    %v62 = vpop.permute.xlu0 %61
    %v64 = vlaneseq
    %v65 = vshrl.u32 %v64, 7
    %v66 = vsub.s32 0, %v65
    %v67 = vrot.slane %v29, %v66
    %v68 = vmul.f32 %v62, %v67
    %v69 = vadd.f32 %v59, %v68
    %v70 = vlaneseq
    %v71 = vshrl.u32 %v70, 7
    %v72 = vsub.s32 0, %v71
    %v73 = vrot.slane %v30, %v72
    %v74 = vadd.f32 %v73, %v50
    %v75 = vadd.f32 %v74, %v69
    %v76 = vtanh.pop %v75
    %v77 = vld [vmem:[#allocation2 + $0x8] sm:$0xff]
    %v78 = vld [vmem:[#allocation2 + $0x10] sm:$0xff]
    %v79 = vld [vmem:[#allocation2 + $0x18] sm:$0xff]
    %v80 = vld [vmem:[#allocation2 + $0x20] sm:$0xff]
    %v81 = vld [vmem:[#allocation2 + $0x28] sm:$0xff]
    %v82 = vld [vmem:[#allocation2 + $0x30] sm:$0xff]
    %v83 = vld [vmem:[#allocation2 + $0x38] sm:$0xff]
    %v84 = vld [vmem:[#allocation2 + $0x40] sm:$0xff]
    %v85 = vld [vmem:[#allocation2 + $0x48] sm:$0xff]
    %v86 = vld [vmem:[#allocation2 + $0x50] sm:$0xff]
    %v87 = vld [vmem:[#allocation2 + $0x58] sm:$0xff]
    %v88 = vld [vmem:[#allocation2 + $0x60] sm:$0xff]
    %v89 = vld [vmem:[#allocation2 + $0x68] sm:$0xff]
    %v90 = vld [vmem:[#allocation2 + $0x70] sm:$0xff]
    %v91 = vld [vmem:[#allocation2 + $0x78] sm:$0xff]
    %v92 = vld [vmem:[#allocation2 + $0x80] sm:$0xff]
    %v93 = vld [vmem:[#allocation2 + $0x189] sm:$0x1]
    %v94 = vlaneseq
    %v95 = vshrl.u32 %v94, 7
    %v96 = vsub.s32 0, %v95
    %v97 = vrot.slane %v93, %v96
    %98 = vmatprep.subr.mxu0 0.0
    %99 = vmatpush1.msra.mxu0 %v77
    %100 = vmatprep.subr.mxu0 0.0
    %101 = vmatpush1.msra.mxu0 %v78
    %102 = vmatprep.subr.mxu0 0.0
    %103 = vmatpush1.msra.mxu0 %v79
    %104 = vmatprep.subr.mxu0 0.0
    %105 = vmatpush1.msra.mxu0 %v80
    %106 = vmatprep.subr.mxu0 0.0
    %107 = vmatpush1.msra.mxu0 %v81
    %108 = vmatprep.subr.mxu0 0.0
    %109 = vmatpush1.msra.mxu0 %v82
    %110 = vmatprep.subr.mxu0 0.0
    %111 = vmatpush1.msra.mxu0 %v83
    %112 = vmatprep.subr.mxu0 0.0
    %113 = vmatpush1.msra.mxu0 %v84
    %114 = vmatprep.subr.mxu0 0.0
    %115 = vmatpush1.msra.mxu0 %v85
    %116 = vmatprep.subr.mxu0 0.0
    %117 = vmatpush1.msra.mxu0 %v86
    %118 = vmatprep.subr.mxu0 0.0
    %119 = vmatpush1.msra.mxu0 %v87
    %120 = vmatprep.subr.mxu0 0.0
    %121 = vmatpush1.msra.mxu0 %v88
    %122 = vmatprep.subr.mxu0 0.0
    %123 = vmatpush1.msra.mxu0 %v89
    %124 = vmatprep.subr.mxu0 0.0
    %125 = vmatpush1.msra.mxu0 %v90
    %126 = vmatprep.subr.mxu0 0.0
    %127 = vmatpush1.msra.mxu0 %v91
    %128 = vmatprep.subr.mxu0 0.0
    %129 = vmatpush1.msra.mxu0 %v92
    %130 = vmatprep.subr.mxu0 0.0
    %131 = vmatpush1.msra.mxu0 0.0
    %132 = vmatprep.subr.mxu0 0.0
    %133 = vmatpush1.msra.mxu0 0.0
    %134 = vmatprep.subr.mxu0 0.0
    %135 = vmatpush1.msra.mxu0 0.0
    %136 = vmatprep.subr.mxu0 0.0
    %137 = vmatpush1.msra.mxu0 0.0
    %138 = vmatprep.subr.mxu0 0.0
    %139 = vmatpush1.msra.mxu0 0.0
    %140 = vmatprep.subr.mxu0 0.0
    %141 = vmatpush1.msra.mxu0 0.0
    %142 = vmatprep.subr.mxu0 0.0
    %143 = vmatpush1.msra.mxu0 0.0
    %144 = vmatprep.subr.mxu0 0.0
    %145 = vmatpush1.msra.mxu0 0.0
    %146 = vmatprep.subr.mxu0 0.0
    %147 = vmatpush1.msra.mxu0 0.0
    %148 = vmatprep.subr.mxu0 0.0
    %149 = vmatpush1.msra.mxu0 0.0
    %150 = vmatprep.subr.mxu0 0.0
    %151 = vmatpush1.msra.mxu0 0.0
    %152 = vmatprep.subr.mxu0 0.0
    %153 = vmatpush1.msra.mxu0 0.0
    %154 = vmatprep.subr.mxu0 0.0
    %155 = vmatpush1.msra.mxu0 0.0
    %156 = vmatprep.subr.mxu0 0.0
    %157 = vmatpush1.msra.mxu0 0.0
    %158 = vmatprep.subr.mxu0 0.0
    %159 = vmatpush1.msra.mxu0 0.0
    %160 = vmatprep.subr.mxu0 0.0
    %161 = vmatpush1.msra.mxu0 0.0
    %162 = vmatprep.mubr.f32.mxu0 0.0
    %163 = vmatmul.mubr.f32.gmra.mrb[0].mxu0 %v76
    %v164 = vpop.f32.mrb[0].mxu0
    %v165 = vadd.f32 %v97, %v164
    %v166 = vpop.f32.mrb[0].mxu0
    %167 = vdwg.mxu0
    %v168 = vtanh.pop %v165
    %v169 = vld [vmem:[#allocation2 + $0x88] sm:$0xff]
    %v170 = vld [vmem:[#allocation2 + $0x90] sm:$0xff]
    %v171 = vld [vmem:[#allocation2 + $0x98] sm:$0xff]
    %v172 = vld [vmem:[#allocation2 + $0xa0] sm:$0xff]
    %v173 = vld [vmem:[#allocation2 + $0xa8] sm:$0xff]
    %v174 = vld [vmem:[#allocation2 + $0xb0] sm:$0xff]
    %v175 = vld [vmem:[#allocation2 + $0xb8] sm:$0xff]
    %v176 = vld [vmem:[#allocation2 + $0xc0] sm:$0xff]
    %v177 = vld [vmem:[#allocation2 + $0xc8] sm:$0xff]
    %v178 = vld [vmem:[#allocation2 + $0xd0] sm:$0xff]
    %v179 = vld [vmem:[#allocation2 + $0xd8] sm:$0xff]
    %v180 = vld [vmem:[#allocation2 + $0xe0] sm:$0xff]
    %v181 = vld [vmem:[#allocation2 + $0xe8] sm:$0xff]
    %v182 = vld [vmem:[#allocation2 + $0xf0] sm:$0xff]
    %v183 = vld [vmem:[#allocation2 + $0xf8] sm:$0xff]
    %v184 = vld [vmem:[#allocation2 + $0x100] sm:$0xff]
    %v185 = vld [vmem:[#allocation2 + $0x18a] sm:$0x1]
    %v186 = vlaneseq
    %v187 = vshrl.u32 %v186, 7
    %v188 = vsub.s32 0, %v187
    %v189 = vrot.slane %v185, %v188
    %190 = vmatprep.subr.mxu0 0.0
    %191 = vmatpush1.msra.mxu0 %v169
    %192 = vmatprep.subr.mxu0 0.0
    %193 = vmatpush1.msra.mxu0 %v170
    %194 = vmatprep.subr.mxu0 0.0
    %195 = vmatpush1.msra.mxu0 %v171
    %196 = vmatprep.subr.mxu0 0.0
    %197 = vmatpush1.msra.mxu0 %v172
    %198 = vmatprep.subr.mxu0 0.0
    %199 = vmatpush1.msra.mxu0 %v173
    %200 = vmatprep.subr.mxu0 0.0
    %201 = vmatpush1.msra.mxu0 %v174
    %202 = vmatprep.subr.mxu0 0.0
    %203 = vmatpush1.msra.mxu0 %v175
    %204 = vmatprep.subr.mxu0 0.0
    %205 = vmatpush1.msra.mxu0 %v176
    %206 = vmatprep.subr.mxu0 0.0
    %207 = vmatpush1.msra.mxu0 %v177
    %208 = vmatprep.subr.mxu0 0.0
    %209 = vmatpush1.msra.mxu0 %v178
    %210 = vmatprep.subr.mxu0 0.0
    %211 = vmatpush1.msra.mxu0 %v179
    %212 = vmatprep.subr.mxu0 0.0
    %213 = vmatpush1.msra.mxu0 %v180
    %214 = vmatprep.subr.mxu0 0.0
    %215 = vmatpush1.msra.mxu0 %v181
    %216 = vmatprep.subr.mxu0 0.0
    %217 = vmatpush1.msra.mxu0 %v182
    %218 = vmatprep.subr.mxu0 0.0
    %219 = vmatpush1.msra.mxu0 %v183
    %220 = vmatprep.subr.mxu0 0.0
    %221 = vmatpush1.msra.mxu0 %v184
    %222 = vmatprep.subr.mxu0 0.0
    %223 = vmatpush1.msra.mxu0 0.0
    %224 = vmatprep.subr.mxu0 0.0
    %225 = vmatpush1.msra.mxu0 0.0
    %226 = vmatprep.subr.mxu0 0.0
    %227 = vmatpush1.msra.mxu0 0.0
    %228 = vmatprep.subr.mxu0 0.0
    %229 = vmatpush1.msra.mxu0 0.0
    %230 = vmatprep.subr.mxu0 0.0
    %231 = vmatpush1.msra.mxu0 0.0
    %232 = vmatprep.subr.mxu0 0.0
    %233 = vmatpush1.msra.mxu0 0.0
    %234 = vmatprep.subr.mxu0 0.0
    %235 = vmatpush1.msra.mxu0 0.0
    %236 = vmatprep.subr.mxu0 0.0
    %237 = vmatpush1.msra.mxu0 0.0
    %238 = vmatprep.subr.mxu0 0.0
    %239 = vmatpush1.msra.mxu0 0.0
    %240 = vmatprep.subr.mxu0 0.0
    %241 = vmatpush1.msra.mxu0 0.0
    %242 = vmatprep.subr.mxu0 0.0
    %243 = vmatpush1.msra.mxu0 0.0
    %244 = vmatprep.subr.mxu0 0.0
    %245 = vmatpush1.msra.mxu0 0.0
    %246 = vmatprep.subr.mxu0 0.0
    %247 = vmatpush1.msra.mxu0 0.0
    %248 = vmatprep.subr.mxu0 0.0
    %249 = vmatpush1.msra.mxu0 0.0
    %250 = vmatprep.subr.mxu0 0.0
    %251 = vmatpush1.msra.mxu0 0.0
    %252 = vmatprep.subr.mxu0 0.0
    %253 = vmatpush1.msra.mxu0 0.0
    %254 = vmatprep.mubr.f32.mxu0 0.0
    %255 = vmatmul.mubr.f32.gmra.mrb[0].mxu0 %v168
    %v256 = vpop.f32.mrb[0].mxu0
    %v257 = vadd.f32 %v189, %v256
    %v258 = vpop.f32.mrb[0].mxu0
    %259 = vdwg.mxu0
    %v260 = vtanh.pop %v257
    %v261 = vld [vmem:[#allocation2 + $0x108] sm:$0xff]
    %v262 = vld [vmem:[#allocation2 + $0x110] sm:$0xff]
    %v263 = vld [vmem:[#allocation2 + $0x118] sm:$0xff]
    %v264 = vld [vmem:[#allocation2 + $0x120] sm:$0xff]
    %v265 = vld [vmem:[#allocation2 + $0x128] sm:$0xff]
    %v266 = vld [vmem:[#allocation2 + $0x130] sm:$0xff]
    %v267 = vld [vmem:[#allocation2 + $0x138] sm:$0xff]
    %v268 = vld [vmem:[#allocation2 + $0x140] sm:$0xff]
    %v269 = vld [vmem:[#allocation2 + $0x148] sm:$0xff]
    %v270 = vld [vmem:[#allocation2 + $0x150] sm:$0xff]
    %v271 = vld [vmem:[#allocation2 + $0x158] sm:$0xff]
    %v272 = vld [vmem:[#allocation2 + $0x160] sm:$0xff]
    %v273 = vld [vmem:[#allocation2 + $0x168] sm:$0xff]
    %v274 = vld [vmem:[#allocation2 + $0x170] sm:$0xff]
    %v275 = vld [vmem:[#allocation2 + $0x178] sm:$0xff]
    %v276 = vld [vmem:[#allocation2 + $0x180] sm:$0xff]
    %v277 = vld [vmem:[#allocation2 + $0x18b] sm:$0x1]
    %v278 = vlaneseq
    %v279 = vshrl.u32 %v278, 7
    %v280 = vsub.s32 0, %v279
    %v281 = vrot.slane %v277, %v280
    %282 = vmatprep.subr.mxu0 0.0
    %283 = vmatpush1.msra.mxu0 %v261
    %284 = vmatprep.subr.mxu0 0.0
    %285 = vmatpush1.msra.mxu0 %v262
    %286 = vmatprep.subr.mxu0 0.0
    %287 = vmatpush1.msra.mxu0 %v263
    %288 = vmatprep.subr.mxu0 0.0
    %289 = vmatpush1.msra.mxu0 %v264
    %290 = vmatprep.subr.mxu0 0.0
    %291 = vmatpush1.msra.mxu0 %v265
    %292 = vmatprep.subr.mxu0 0.0
    %293 = vmatpush1.msra.mxu0 %v266
    %294 = vmatprep.subr.mxu0 0.0
    %295 = vmatpush1.msra.mxu0 %v267
    %296 = vmatprep.subr.mxu0 0.0
    %297 = vmatpush1.msra.mxu0 %v268
    %298 = vmatprep.subr.mxu0 0.0
    %299 = vmatpush1.msra.mxu0 %v269
    %300 = vmatprep.subr.mxu0 0.0
    %301 = vmatpush1.msra.mxu0 %v270
    %302 = vmatprep.subr.mxu0 0.0
    %303 = vmatpush1.msra.mxu0 %v271
    %304 = vmatprep.subr.mxu0 0.0
    %305 = vmatpush1.msra.mxu0 %v272
    %306 = vmatprep.subr.mxu0 0.0
    %307 = vmatpush1.msra.mxu0 %v273
    %308 = vmatprep.subr.mxu0 0.0
    %309 = vmatpush1.msra.mxu0 %v274
    %310 = vmatprep.subr.mxu0 0.0
    %311 = vmatpush1.msra.mxu0 %v275
    %312 = vmatprep.subr.mxu0 0.0
    %313 = vmatpush1.msra.mxu0 %v276
    %314 = vmatprep.subr.mxu0 0.0
    %315 = vmatpush1.msra.mxu0 0.0
    %316 = vmatprep.subr.mxu0 0.0
    %317 = vmatpush1.msra.mxu0 0.0
    %318 = vmatprep.subr.mxu0 0.0
    %319 = vmatpush1.msra.mxu0 0.0
    %320 = vmatprep.subr.mxu0 0.0
    %321 = vmatpush1.msra.mxu0 0.0
    %322 = vmatprep.subr.mxu0 0.0
    %323 = vmatpush1.msra.mxu0 0.0
    %324 = vmatprep.subr.mxu0 0.0
    %325 = vmatpush1.msra.mxu0 0.0
    %326 = vmatprep.subr.mxu0 0.0
    %327 = vmatpush1.msra.mxu0 0.0
    %328 = vmatprep.subr.mxu0 0.0
    %329 = vmatpush1.msra.mxu0 0.0
    %330 = vmatprep.subr.mxu0 0.0
    %331 = vmatpush1.msra.mxu0 0.0
    %332 = vmatprep.subr.mxu0 0.0
    %333 = vmatpush1.msra.mxu0 0.0
    %334 = vmatprep.subr.mxu0 0.0
    %335 = vmatpush1.msra.mxu0 0.0
    %336 = vmatprep.subr.mxu0 0.0
    %337 = vmatpush1.msra.mxu0 0.0
    %338 = vmatprep.subr.mxu0 0.0
    %339 = vmatpush1.msra.mxu0 0.0
    %340 = vmatprep.subr.mxu0 0.0
    %341 = vmatpush1.msra.mxu0 0.0
    %342 = vmatprep.subr.mxu0 0.0
    %343 = vmatpush1.msra.mxu0 0.0
    %344 = vmatprep.subr.mxu0 0.0
    %345 = vmatpush1.msra.mxu0 0.0
    %346 = vmatprep.mubr.f32.mxu0 0.0
    %347 = vmatmul.mubr.f32.gmra.mrb[0].mxu0 %v260
    %v348 = vpop.f32.mrb[0].mxu0
    %v349 = vadd.f32 %v281, %v348
    %v350 = vpop.f32.mrb[0].mxu0
    %351 = vdwg.mxu0
    %v352 = vld [vmem:[#allocation2 + $0x18c] sm:$0x1]
    %v353 = vlaneseq
    %v354 = vshrl.u32 %v353, 7
    %v355 = vsub.s32 0, %v354
    %v356 = vrot.slane %v352, %v355
    %v357 = vsub.f32 %v25, %v356
    %v358 = vmul.f32 %v357, %v357
    %360 = vrot.lane.b32.xlu0 %v358, 127
    %v361 = vpop.permute.xlu0 %360
    %v363 = vadd.f32 %v358, %v361
    %v364 = vmul.f32 %v352, %v352
    %v365 = vlaneseq
    %v366 = vshrl.u32 %v365, 7
    %v367 = vsub.s32 0, %v366
    %v368 = vrot.slane %v364, %v367
    %370 = vrot.lane.b32.xlu0 %v368, 126
    %v371 = vpop.permute.xlu0 %370
    %v373 = vsub.f32 %v363, %v371
    %v374 = vmul.f32 %v357, 2.0
    %375 = vrot.lane.b32.xlu0 %v25, 126
    %v376 = vpop.permute.xlu0 %375
    %v378 = vmul.f32 %v374, %v376
    %v379 = vand.u32 2147483647, %v25
    %vm380 = vcmp.le.f32.partialorder %v379, 0.7853982
    %vm381 = vcmp.lt.s32.totalorder %v25, 0
    %v382 = vand.u32 %v25, 2139095040
    %v383 = vshrl.u32 %v382, 23
    %v384 = vsub.s32 %v383, 127
    %v385 = vand.u32 2147483647, %v25
    %v386 = vand.u32 %v385, 8388607
    %v387 = vor.u32 %v386, 8388608
    %v388 = vsub.s32 0, %v387
    %v389 = vadd.s32 %v384, 1
    %vm390 = vcmp.gt.s32.totalorder %v389, 0
    %v391 = vsel %vm390, %v389, 0
    %v392 = vshrl.u32 %v391, 5
    %v393 = vand.u32 %v391, 31
    %v394 = vsub.s32 32, %v393
    %v395 = vshrl.u32 683565275, %v394
    %v396 = vshll.u32 683565275, %v393
    %v397 = vshrl.u32 2475754826, %v394
    %v398 = vor.u32 %v396, %v397
    %v399 = vshll.u32 2475754826, %v393
    %v400 = vshrl.u32 2131351028, %v394
    %v401 = vor.u32 %v399, %v400
    %v402 = vshll.u32 2131351028, %v393
    %v403 = vshrl.u32 2102212464, %v394
    %v404 = vor.u32 %v402, %v403
    %v405 = vshll.u32 2102212464, %v393
    %v406 = vshrl.u32 920167782, %v394
    %v407 = vor.u32 %v405, %v406
    %v408 = vshll.u32 920167782, %v393
    %v409 = vshrl.u32 1326507024, %v394
    %v410 = vor.u32 %v408, %v409
    %vm411 = vcmp.lt.s32.totalorder %v392, 1
    %vm412 = vcmp.lt.s32.totalorder %v392, 2
    %vm413 = vcmp.lt.s32.totalorder %v392, 3
    %vm414 = vcmp.lt.s32.totalorder %v392, 4
    %v415 = vsel %vm411, %v395, %v398
    %v416 = vsel %vm414, %v404, 2102212464
    %v417 = vsel %vm413, %v401, %v416
    %v418 = vsel %vm412, %v415, %v417
    %v419 = vsel %vm411, %v398, %v401
    %v420 = vsel %vm414, %v407, 920167782
    %v421 = vsel %vm413, %v404, %v420
    %v422 = vsel %vm412, %v419, %v421
    %v423 = vsel %vm411, %v401, %v404
    %v424 = vsel %vm414, %v410, 1326507024
    %v425 = vsel %vm413, %v407, %v424
    %v426 = vsel %vm412, %v423, %v425
    %v427 = vshll.u32 %v387, 8
    %v428 = vmul.u32.u64.compose %v427, %v426
    %v429 = vextract.low.u32 %v428
    %v430 = vextract.high.u32 %v428
    %v431 = vmul.u32.u64.compose %v427, %v422
    %v432 = vextract.low.u32 %v431
    %v433 = vextract.high.u32 %v431
    %v434 = vmul.u32 %v427, %v418
    %v435 = vadd.s32 %v430, %v432
    %vm436 = vc.u32 %v430, %v432
    %v437 = vadd.s32 %v433, 1
    %v438 = vsel %vm436, %v437, %v433
    %v439 = vadd.s32 %v434, %v438
    %v440 = vadd.s32 %v439, 536870912
    %v441 = vshrl.u32 %v440, 30
    %v442 = vshll.u32 %v441, 30
    %v443 = vsub.s32 %v439, %v442
    %vm444 = vcmp.lt.s32.totalorder %v443, 0
    %v445 = vsub.s32 0, %v443
    %v446 = vsel %vm444, %v445, %v443
    %v447 = vclz %v446
    %v448 = vsub.s32 %v447, 2
    %vm449 = vcmp.gt.s32.totalorder 0, %v448
    %v450 = vsel %vm449, 0, %v448
    %v451 = vsub.s32 32, %v450
    %v452 = vshll.u32 %v443, %v450
    %v453 = vshrl.u32 %v435, %v451
    %v454 = vor.u32 %v452, %v453
    %v455 = vsub.s32 4294967266, %v450
    %v456 = vadd.s32 %v455, 127
    %v457 = vshll.u32 %v456, 23
    %v458 = vor.u32 4788187, %v457
    %v459 = vand.u32 2147483647, %v458
    %v461 = vcvt.s32.f32 %v454
    %v462 = vmul.f32 %v461, %v459
    %v463 = vxor.u32 %v462, 2147483648
    %v464 = vsel %vm381, %v463, %v462
    %v465 = vsub.s32 4, %v441
    %v466 = vsel %vm381, %v465, %v441
    %v467 = vsel %vm380, %v25, %v464
    %v468 = vsel %vm380, 0, %v466
    %v469 = vcosq.f32.pop %v467
    %v470 = vsinq.f32.pop %v467
    %vm471 = vweird.f32 %v25
    %v472 = vand.u32 %v468, 3
    %vm473 = vcmp.lt.s32.totalorder %v472, 2
    %vm474 = vcmp.eq.s32.totalorder %v472, 0
    %v475 = vxor.u32 %v470, 2147483648
    %v476 = vsel %vm474, %v469, %v475
    %vm477 = vcmp.eq.s32.totalorder %v472, 2
    %v478 = vxor.u32 %v469, 2147483648
    %v479 = vsel %vm477, %v478, %v470
    %v480 = vsel %vm473, %v476, %v479
    %v481 = vsel %vm471, nan, %v480
    %483 = vrot.lane.b32.xlu0 %v481, 125
    %v484 = vpop.permute.xlu0 %483
    %v486 = vmul.f32 %v378, %v484
    %487 = vrot.lane.b32.xlu0 %v25, 127
    %v488 = vpop.permute.xlu0 %487
    %v490 = vmul.f32 %v374, %v488
    %v491 = vand.u32 2147483647, %v25
    %vm492 = vcmp.le.f32.partialorder %v491, 0.7853982
    %vm493 = vcmp.lt.s32.totalorder %v25, 0
    %v494 = vand.u32 %v25, 2139095040
    %v495 = vshrl.u32 %v494, 23
    %v496 = vsub.s32 %v495, 127
    %v497 = vand.u32 2147483647, %v25
    %v498 = vand.u32 %v497, 8388607
    %v499 = vor.u32 %v498, 8388608
    %v500 = vsub.s32 0, %v499
    %v501 = vadd.s32 %v496, 1
    %vm502 = vcmp.gt.s32.totalorder %v501, 0
    %v503 = vsel %vm502, %v501, 0
    %v504 = vshrl.u32 %v503, 5
    %v505 = vand.u32 %v503, 31
    %v506 = vsub.s32 32, %v505
    %v507 = vshrl.u32 683565275, %v506
    %v508 = vshll.u32 683565275, %v505
    %v509 = vshrl.u32 2475754826, %v506
    %v510 = vor.u32 %v508, %v509
    %v511 = vshll.u32 2475754826, %v505
    %v512 = vshrl.u32 2131351028, %v506
    %v513 = vor.u32 %v511, %v512
    %v514 = vshll.u32 2131351028, %v505
    %v515 = vshrl.u32 2102212464, %v506
    %v516 = vor.u32 %v514, %v515
    %v517 = vshll.u32 2102212464, %v505
    %v518 = vshrl.u32 920167782, %v506
    %v519 = vor.u32 %v517, %v518
    %v520 = vshll.u32 920167782, %v505
    %v521 = vshrl.u32 1326507024, %v506
    %v522 = vor.u32 %v520, %v521
    %vm523 = vcmp.lt.s32.totalorder %v504, 1
    %vm524 = vcmp.lt.s32.totalorder %v504, 2
    %vm525 = vcmp.lt.s32.totalorder %v504, 3
    %vm526 = vcmp.lt.s32.totalorder %v504, 4
    %v527 = vsel %vm523, %v507, %v510
    %v528 = vsel %vm526, %v516, 2102212464
    %v529 = vsel %vm525, %v513, %v528
    %v530 = vsel %vm524, %v527, %v529
    %v531 = vsel %vm523, %v510, %v513
    %v532 = vsel %vm526, %v519, 920167782
    %v533 = vsel %vm525, %v516, %v532
    %v534 = vsel %vm524, %v531, %v533
    %v535 = vsel %vm523, %v513, %v516
    %v536 = vsel %vm526, %v522, 1326507024
    %v537 = vsel %vm525, %v519, %v536
    %v538 = vsel %vm524, %v535, %v537
    %v539 = vshll.u32 %v499, 8
    %v540 = vmul.u32.u64.compose %v539, %v538
    %v541 = vextract.low.u32 %v540
    %v542 = vextract.high.u32 %v540
    %v543 = vmul.u32.u64.compose %v539, %v534
    %v544 = vextract.low.u32 %v543
    %v545 = vextract.high.u32 %v543
    %v546 = vmul.u32 %v539, %v530
    %v547 = vadd.s32 %v542, %v544
    %vm548 = vc.u32 %v542, %v544
    %v549 = vadd.s32 %v545, 1
    %v550 = vsel %vm548, %v549, %v545
    %v551 = vadd.s32 %v546, %v550
    %v552 = vadd.s32 %v551, 536870912
    %v553 = vshrl.u32 %v552, 30
    %v554 = vshll.u32 %v553, 30
    %v555 = vsub.s32 %v551, %v554
    %vm556 = vcmp.lt.s32.totalorder %v555, 0
    %v557 = vsub.s32 0, %v555
    %v558 = vsel %vm556, %v557, %v555
    %v559 = vclz %v558
    %v560 = vsub.s32 %v559, 2
    %vm561 = vcmp.gt.s32.totalorder 0, %v560
    %v562 = vsel %vm561, 0, %v560
    %v563 = vsub.s32 32, %v562
    %v564 = vshll.u32 %v555, %v562
    %v565 = vshrl.u32 %v547, %v563
    %v566 = vor.u32 %v564, %v565
    %v567 = vsub.s32 4294967266, %v562
    %v568 = vadd.s32 %v567, 127
    %v569 = vshll.u32 %v568, 23
    %v570 = vor.u32 4788187, %v569
    %v571 = vand.u32 2147483647, %v570
    %v573 = vcvt.s32.f32 %v566
    %v574 = vmul.f32 %v573, %v571
    %v575 = vxor.u32 %v574, 2147483648
    %v576 = vsel %vm493, %v575, %v574
    %v577 = vsub.s32 4, %v553
    %v578 = vsel %vm493, %v577, %v553
    %v579 = vsel %vm492, %v25, %v576
    %v580 = vsel %vm492, 0, %v578
    %v581 = vcosq.f32.pop %v579
    %v582 = vsinq.f32.pop %v579
    %vm583 = vweird.f32 %v25
    %v584 = vadd.s32 %v580, 3
    %v585 = vand.u32 %v584, 3
    %vm586 = vcmp.lt.s32.totalorder %v585, 2
    %vm587 = vcmp.eq.s32.totalorder %v585, 0
    %v588 = vxor.u32 %v582, 2147483648
    %v589 = vsel %vm587, %v581, %v588
    %vm590 = vcmp.eq.s32.totalorder %v585, 2
    %v591 = vxor.u32 %v581, 2147483648
    %v592 = vsel %vm590, %v591, %v582
    %v593 = vsel %vm586, %v589, %v592
    %v594 = vsel %vm583, nan, %v593
    %596 = vrot.lane.b32.xlu0 %v594, 126
    %v597 = vpop.permute.xlu0 %596
    %v599 = vmul.f32 %v490, %v597
    %601 = vrot.lane.b32.xlu0 %v599, 127
    %v602 = vpop.permute.xlu0 %601
    %v604 = vadd.f32 %v486, %v602
    %v605 = vadd.f32 %v604, %v373
    %v606 = vmul.f32 %v25, %v25
    %608 = vrot.lane.b32.xlu0 %v606, 1
    %v609 = vpop.permute.xlu0 %608
    %v611 = vsub.f32 %v368, %v609
    %v612 = vsub.f32 %v611, %v606
    %v613 = vmul.f32 %v25, 2.0
    %615 = vrot.lane.b32.xlu0 %v613, 2
    %v616 = vpop.permute.xlu0 %615
    %619 = vrot.lane.b32.xlu0 %v605, 6
    %v620 = vpop.permute.xlu0 %619
    %623 = vrot.lane.b32.xlu0 %v612, 4
    %v624 = vpop.permute.xlu0 %623
    %vm626 = vcmask 15360
    %v627 = vsel %vm626, %v349, 0.0
    %vm628 = vcmask 31744
    %v629 = vsel %vm628, %v627, %v616
    %vm630 = vcmask 39936
    %v631 = vsel %vm630, %v629, %v616
    %vm632 = vcmask 48128
    %v633 = vsel %vm632, %v631, %v620
    %vm634 = vcmask 56320
    %v635 = vsel %vm634, %v633, %v624
    %vm636 = vcmask 64512
    %v637 = vsel %vm636, %v635, 0.0
    %638 = vst [vmem:[%s2] sm:$0xff] %v637
    // Predicated region
    $region14: #{class_knn_forward.1} parent=1 // pred_check
      _
    $region15: #{class_knn_forward.1} parent=1 // pred_check_branch
      %640 = sbr.rel (0) target = $region17
    $region16: #{class_knn_forward.1} parent=1 // pred_region
      _
    $region17: #{class_knn_forward.1} parent=1 // pred_fallthru
      _
    // Predicated region
    $region18: #{class_knn_forward.1} parent=1 // pred_check
      _
    $region19: #{class_knn_forward.1} parent=1 // pred_check_branch
      %642 = sbr.rel (0) target = $region21
    $region20: #{class_knn_forward.1} parent=1 // pred_region
      _
    $region21: #{class_knn_forward.1} parent=1 // pred_fallthru
      _
    %643 = vsyncpa [#allocation3], 1

</llo_original>
